<compile_context>
chip_gen: v7x
topology: tpu7x:2x2x1
jax: 0.10.0
libtpu: 0.0.40
codegen_flags: <defaults>
</compile_context>

<pallas_src>
import jax
import jax.numpy as jnp
from jax import lax
from jax.experimental import pallas as pl
from jax.experimental.pallas import tpu as pltpu


def _round_up(x, m):
    return (x + m - 1) // m * m


# ---------------------------------------------------------------------------
# Fused kernel factory: conv -> sigmoid -> maxpool -> fc1 -> sigmoid -> fc2
#                       -> sigmoid -> fc3, for one batch tile of TB samples.
# ---------------------------------------------------------------------------
def _make_lenet_kernel(meta, tb):
    offs = meta["offsets"]            # name -> (row_offset, (rows, cols)); static

    def slab(w_ref, name):
        r, (nr, nc) = offs[name]
        return w_ref[r:r + nr, 0:nc]  # static slices into the packed param slab

    def kernel(p_ref, w_ref, out_ref):
        # p_ref : (4*tb, K)  -- one im2col row per (pool-window corner, sample)
        # w_ref : packed (rows, 150) f32 parameter slab, VMEM resident
        wcb = slab(w_ref, "wcb")                                  # (K, 150)

        # ONE MXU dot for all 4 corners of the whole batch tile: each conv
        # weight tile is loaded into the MXU once and 4*tb rows stream
        # through it (previously 4 separate M=tb dots).
        y = jnp.dot(p_ref[...], wcb,
                    preferred_element_type=jnp.float32)           # (4*tb, 150)

        # MaxPool2d(2,2) == elementwise max over the 4 corner row-groups.
        ym = jnp.maximum(jnp.maximum(y[0 * tb:1 * tb], y[1 * tb:2 * tb]),
                         jnp.maximum(y[2 * tb:3 * tb], y[3 * tb:4 * tb]))

        # Sigmoid is monotonic & the conv bias is shared across the window,
        # so bias + sigmoid once AFTER the max is exact (4x less EUP work).
        feat = jax.nn.sigmoid(ym + slab(w_ref, "bc"))             # (tb, 150)

        h = jax.nn.sigmoid(
            jnp.dot(feat, slab(w_ref, "w1"),
                    preferred_element_type=jnp.float32) + slab(w_ref, "b1"))
        h = jax.nn.sigmoid(
            jnp.dot(h, slab(w_ref, "w2"),
                    preferred_element_type=jnp.float32) + slab(w_ref, "b2"))

        # fc3 has N=1: VPU multiply + lane reduce beats a masked MXU pass.
        out_ref[...] = (jnp.sum(h * slab(w_ref, "w3"), axis=-1, keepdims=True)
                        + slab(w_ref, "b3"))                      # (tb, 1)

    return kernel


# ---------------------------------------------------------------------------
# Wrapper glue: im2col + one-time parameter re-layout/packing
# ---------------------------------------------------------------------------
def _im2col_corner_stack(x):
    """x: (B, Cin, H, W) NCHW -> (4, B, (H//2)*(W//2)*Cin*9).

    Axis 0 is the 2x2 max-pool-window corner; the last axis is ordered
    (pool pixel p = i*(W//2)+j, cin, kh, kw) to match the block-diagonal
    conv weight built in prepare_params()."""
    B, C, H, W = x.shape
    Hp, Wp = H // 2, W // 2
    xp = jnp.pad(x, ((0, 0), (0, 0), (1, 1), (1, 1)))
    patches = jnp.stack(
        [xp[:, :, dh:dh + H, dw:dw + W] for dh in range(3) for dw in range(3)],
        axis=-1)                                                  # (B,C,H,W,9)
    patches = patches.transpose(0, 2, 3, 1, 4).reshape(B, H, W, C * 9)
    corners = [patches[:, a::2, b::2, :].reshape(B, Hp * Wp * C * 9)
               for a in range(2) for b in range(2)]
    # TODO(synk): for very large batches, move patch extraction in-kernel (DMA
    # the raw padded boards and build the 9 taps with shifted slices /
    # pltpu.roll) to avoid the 9x im2col HBM inflation; at small B this XLA
    # glue fuses under jit and is irrelevant.
    return jnp.stack(corners, axis=0)


def prepare_params(params):
    """One-time re-layout: PyTorch-shaped weights -> one packed f32 slab plus
    static offsets (2 kernel inputs instead of 9)."""
    conv_w = params["conv_w"]
    cout, cin, kh, kw = conv_w.shape
    assert (kh, kw) == (3, 3), "kernel assumes a 3x3 conv with padding=1"
    n_pool = params["fc1_w"].shape[1] // cout
    assert params["fc1_w"].shape[1] == cout * n_pool

    wc = conv_w.reshape(cout, cin * kh * kw).T.astype(jnp.float32)    # (18, 6)
    # Block-diagonal conv weight: output column p*6+c == feature (pixel, chan),
    # i.e. the conv matmul lands directly in fc1's input layout.
    wcb = jnp.kron(jnp.eye(n_pool, dtype=jnp.float32), wc)            # (450,150)
    bc = jnp.tile(params["conv_b"].reshape(1, cout), (1, n_pool))     # (1, 150)
    # fc1 rows permuted from PyTorch channel-major (c*n_pool+p) flatten order
    # to the kernel's pixel-major (p*6+c) order.
    w1 = (params["fc1_w"].T.reshape(cout, n_pool, -1)
          .transpose(1, 0, 2).reshape(cout * n_pool, -1))             # (150,120)

    pieces = {
        "wcb": wcb,
        "bc": bc,
        "w1": w1,
        "b1": params["fc1_b"].reshape(1, -1),
        "w2": params["fc2_w"].T,                                      # (120, 84)
        "b2": params["fc2_b"].reshape(1, -1),
        "w3": params["fc3_w"].reshape(1, -1),                         # (1, 84)
        "b3": params["fc3_b"].reshape(1, 1),
    }

    lane = max(int(a.shape[1]) for a in pieces.values())              # 150
    offsets, row = {}, 0
    for name, a in pieces.items():
        offsets[name] = (row, (int(a.shape[0]), int(a.shape[1])))
        row = _round_up(row + int(a.shape[0]), 8)     # keep segments 8-aligned
    wbuf = jnp.zeros((_round_up(row, 8), lane), jnp.float32)
    for name, a in pieces.items():
        r, (nr, nc) = offsets[name]
        wbuf = wbuf.at[r:r + nr, :nc].set(a.astype(jnp.float32))

    # TODO(synk): for large-batch serving, store the weight slab (and patches)
    # in bf16 to halve DMA bytes; kept f32 here to preserve a tight tolerance
    # against the f32 reference at these latency-bound sizes.
    meta = {"offsets": offsets, "cout": int(cout), "cin": int(cin),
            "n_pool": int(n_pool)}
    return wbuf, meta


def lenet_forward(x, wbuf, meta, *, batch_tile=512):
    B, C, H, W = x.shape
    assert H % 2 == 0 and W % 2 == 0, "MaxPool2d(2,2) expects even H and W"
    assert C == meta["cin"] and (H // 2) * (W // 2) == meta["n_pool"]
    Kc = meta["offsets"]["wcb"][1][0]                # n_pool * cin * 9

    TB = min(batch_tile, _round_up(B, 8))            # batch rows per grid step
    G = -(-B // TB)                                  # number of grid steps
    B_pad = G * TB

    p_all = _im2col_corner_stack(x)                  # (4, B, Kc)
    if B_pad != B:
        p_all = jnp.pad(p_all, ((0, 0), (0, B_pad - B), (0, 0)))
    # Row order (grid step, corner, local sample): each grid step reads one
    # contiguous (4*TB, Kc) slab, so no in-kernel reshape is needed.
    p2 = (p_all.reshape(4, G, TB, Kc).transpose(1, 0, 2, 3)
          .reshape(G * 4 * TB, Kc))

    out = pl.pallas_call(
        _make_lenet_kernel(meta, TB),
        out_shape=jax.ShapeDtypeStruct((B_pad, 1), jnp.float32),
        grid=(G,),
        in_specs=[
            pl.BlockSpec((4 * TB, Kc), lambda g: (g, 0)),     # batch tile
            pl.BlockSpec(wbuf.shape, lambda g: (0, 0)),       # resident weights
        ],
        out_specs=pl.BlockSpec((TB, 1), lambda g: (g, 0)),
        compiler_params=pltpu.CompilerParams(
            dimension_semantics=("parallel",)),               # v7x: 2 TCs
    )(p2, wbuf)
    return out[:B]


# ---------------------------------------------------------------------------
# Pure-JAX reference (independent path) for the correctness check
# ---------------------------------------------------------------------------
def lenet_reference(x, params):
    y = lax.conv_general_dilated(
        x, params["conv_w"], window_strides=(1, 1), padding=((1, 1), (1, 1)),
        dimension_numbers=("NCHW", "OIHW", "NCHW"))
    y = y + params["conv_b"].reshape(1, 6, 1, 1)
    y = jax.nn.sigmoid(y)
    y = lax.reduce_window(y, -jnp.inf, lax.max, (1, 1, 2, 2), (1, 1, 2, 2),
                          "VALID")
    y = y.reshape(y.shape[0], -1)
    y = jax.nn.sigmoid(y @ params["fc1_w"].T + params["fc1_b"])
    y = jax.nn.sigmoid(y @ params["fc2_w"].T + params["fc2_b"])
    y = y @ params["fc3_w"].T + params["fc3_b"]
    return y


# ---------------------------------------------------------------------------
if __name__ == "__main__":
    board_size = 10   # LeNet default: input (B, 2, 10, 10)
    key = jax.random.PRNGKey(0)
    ks = jax.random.split(key, 10)

    # Deterministic synthetic parameters (PyTorch shapes: weight=(out, in, ...)).
    params = {
        "conv_w": jax.random.normal(ks[0], (6, 2, 3, 3), jnp.float32) * 0.2,
        "conv_b": jax.random.normal(ks[1], (6,), jnp.float32) * 0.1,
        "fc1_w": jax.random.normal(
            ks[2], (120, 6 * board_size * board_size // 4), jnp.float32) * 0.1,
        "fc1_b": jax.random.normal(ks[3], (120,), jnp.float32) * 0.1,
        "fc2_w": jax.random.normal(ks[4], (84, 120), jnp.float32) * 0.1,
        "fc2_b": jax.random.normal(ks[5], (84,), jnp.float32) * 0.1,
        "fc3_w": jax.random.normal(ks[6], (1, 84), jnp.float32) * 0.1,
        "fc3_b": jax.random.normal(ks[7], (1,), jnp.float32) * 0.1,
    }
    wbuf, meta = prepare_params(params)

    # --- small batch (single grid step) -------------------------------------
    x = jax.random.normal(ks[8], (2, 2, board_size, board_size), jnp.float32)
    fwd = jax.jit(lambda xx, wb: lenet_forward(xx, wb, meta))
    out = jax.block_until_ready(fwd(x, wbuf))
    ref = jax.block_until_ready(lenet_reference(x, params))
    assert out.shape == (2, 1), out.shape
    assert jnp.allclose(out, ref, rtol=2e-4, atol=2e-4), (out, ref)

    # --- larger batch exercising the parallel batch grid (G>1) + padding ----
    xb = jax.random.normal(ks[9], (100, 2, board_size, board_size), jnp.float32)
    fwd_b = jax.jit(lambda xx, wb: lenet_forward(xx, wb, meta, batch_tile=32))
    out_b = jax.block_until_ready(fwd_b(xb, wbuf))
    ref_b = jax.block_until_ready(lenet_reference(xb, params))
    assert out_b.shape == (100, 1), out_b.shape
    assert jnp.allclose(out_b, ref_b, rtol=2e-4, atol=2e-4), (
        float(jnp.max(jnp.abs(out_b - ref_b))))

    print("KERNEL_OK")
</pallas_src>

<mosaic_0001>
module attributes {stable_mosaic.version = 11 : i64} {
  func.func @kernel(%arg0: i32, %arg1: memref<32x450xf32, #tpu.memory_space<vmem>>, %arg2: memref<768x150xf32, #tpu.memory_space<vmem>>, %arg3: memref<8x1xf32, #tpu.memory_space<vmem>>) attributes {dimension_semantics = [#tpu.dimension_semantics<parallel>], iteration_bounds = array<i64: 1>, scalar_prefetch = 0 : i64, scratch_operands = 0 : i64, tpu.core_type = #tpu.core_type<tc>, window_params = [{transform_indices = @transform_0, window_bounds = array<i64: 32, 450>}, {pipeline_mode = #tpu.pipeline_mode<synchronous>, transform_indices = @transform_1, window_bounds = array<i64: 768, 150>}, {transform_indices = @transform_2, window_bounds = array<i64: 8, 1>}]} {
    %c0 = arith.constant 0 : index
    %c0_0 = arith.constant 0 : index
    %0 = vector.load %arg2[%c0, %c0_0] : memref<768x150xf32, #tpu.memory_space<vmem>>, vector<450x150xf32>
    %c0_1 = arith.constant 0 : index
    %c0_2 = arith.constant 0 : index
    %1 = vector.load %arg1[%c0_1, %c0_2] : memref<32x450xf32, #tpu.memory_space<vmem>>, vector<32x450xf32>
    %cst = arith.constant dense<0.000000e+00> : vector<32x150xf32>
    %2 = tpu.matmul %1, %0, %cst {dimension_numbers = #tpu.dot_dimension_numbers<[1], [0], [0], [1], [0, 0, 1, 1], [], []>} : vector<32x450xf32>, vector<450x150xf32>, vector<32x150xf32> -> vector<32x150xf32>
    %3 = vector.extract_strided_slice %2 {offsets = [0, 0], sizes = [8, 150], strides = [1, 1]} : vector<32x150xf32> to vector<8x150xf32>
    %4 = vector.extract_strided_slice %2 {offsets = [8, 0], sizes = [8, 150], strides = [1, 1]} : vector<32x150xf32> to vector<8x150xf32>
    %5 = arith.maximumf %3, %4 : vector<8x150xf32>
    %6 = vector.extract_strided_slice %2 {offsets = [16, 0], sizes = [8, 150], strides = [1, 1]} : vector<32x150xf32> to vector<8x150xf32>
    %7 = vector.extract_strided_slice %2 {offsets = [24, 0], sizes = [8, 150], strides = [1, 1]} : vector<32x150xf32> to vector<8x150xf32>
    %8 = arith.maximumf %6, %7 : vector<8x150xf32>
    %9 = arith.maximumf %5, %8 : vector<8x150xf32>
    %c456 = arith.constant 456 : index
    %c0_3 = arith.constant 0 : index
    %10 = vector.load %arg2[%c456, %c0_3] : memref<768x150xf32, #tpu.memory_space<vmem>>, vector<1x150xf32>
    %11 = vector.broadcast %10 : vector<1x150xf32> to vector<8x150xf32>
    %12 = arith.addf %9, %11 : vector<8x150xf32>
    %13 = arith.negf %12 : vector<8x150xf32>
    %14 = math.exp %13 : vector<8x150xf32>
    %cst_4 = arith.constant 1.000000e+00 : f32
    %15 = vector.broadcast %cst_4 : f32 to vector<8x150xf32>
    %16 = arith.addf %15, %14 : vector<8x150xf32>
    %17 = arith.divf %15, %16 : vector<8x150xf32>
    %c464 = arith.constant 464 : index
    %c0_5 = arith.constant 0 : index
    %18 = vector.load %arg2[%c464, %c0_5] : memref<768x150xf32, #tpu.memory_space<vmem>>, vector<150x120xf32>
    %cst_6 = arith.constant dense<0.000000e+00> : vector<8x120xf32>
    %19 = tpu.matmul %17, %18, %cst_6 {dimension_numbers = #tpu.dot_dimension_numbers<[1], [0], [0], [1], [0, 0, 1, 1], [], []>} : vector<8x150xf32>, vector<150x120xf32>, vector<8x120xf32> -> vector<8x120xf32>
    %c616 = arith.constant 616 : index
    %c0_7 = arith.constant 0 : index
    %20 = vector.load %arg2[%c616, %c0_7] : memref<768x150xf32, #tpu.memory_space<vmem>>, vector<1x120xf32>
    %21 = vector.broadcast %20 : vector<1x120xf32> to vector<8x120xf32>
    %22 = arith.addf %19, %21 : vector<8x120xf32>
    %23 = arith.negf %22 : vector<8x120xf32>
    %24 = math.exp %23 : vector<8x120xf32>
    %cst_8 = arith.constant 1.000000e+00 : f32
    %25 = vector.broadcast %cst_8 : f32 to vector<8x120xf32>
    %26 = arith.addf %25, %24 : vector<8x120xf32>
    %27 = arith.divf %25, %26 : vector<8x120xf32>
    %c624 = arith.constant 624 : index
    %c0_9 = arith.constant 0 : index
    %28 = vector.load %arg2[%c624, %c0_9] : memref<768x150xf32, #tpu.memory_space<vmem>>, vector<120x84xf32>
    %cst_10 = arith.constant dense<0.000000e+00> : vector<8x84xf32>
    %29 = tpu.matmul %27, %28, %cst_10 {dimension_numbers = #tpu.dot_dimension_numbers<[1], [0], [0], [1], [0, 0, 1, 1], [], []>} : vector<8x120xf32>, vector<120x84xf32>, vector<8x84xf32> -> vector<8x84xf32>
    %c744 = arith.constant 744 : index
    %c0_11 = arith.constant 0 : index
    %30 = vector.load %arg2[%c744, %c0_11] : memref<768x150xf32, #tpu.memory_space<vmem>>, vector<1x84xf32>
    %31 = vector.broadcast %30 : vector<1x84xf32> to vector<8x84xf32>
    %32 = arith.addf %29, %31 : vector<8x84xf32>
    %33 = arith.negf %32 : vector<8x84xf32>
    %34 = math.exp %33 : vector<8x84xf32>
    %cst_12 = arith.constant 1.000000e+00 : f32
    %35 = vector.broadcast %cst_12 : f32 to vector<8x84xf32>
    %36 = arith.addf %35, %34 : vector<8x84xf32>
    %37 = arith.divf %35, %36 : vector<8x84xf32>
    %c752 = arith.constant 752 : index
    %c0_13 = arith.constant 0 : index
    %38 = vector.load %arg2[%c752, %c0_13] : memref<768x150xf32, #tpu.memory_space<vmem>>, vector<1x84xf32>
    %39 = vector.broadcast %38 : vector<1x84xf32> to vector<8x84xf32>
    %40 = arith.mulf %37, %39 : vector<8x84xf32>
    %cst_14 = arith.constant dense<0.000000e+00> : vector<8xf32>
    %41 = vector.multi_reduction <add>, %40, %cst_14 [1] : vector<8x84xf32> to vector<8xf32>
    %42 = vector.shape_cast %41 : vector<8xf32> to vector<8x1xf32>
    %c760 = arith.constant 760 : index
    %c0_15 = arith.constant 0 : index
    %43 = vector.load %arg2[%c760, %c0_15] : memref<768x150xf32, #tpu.memory_space<vmem>>, vector<1x1xf32>
    %44 = vector.broadcast %43 : vector<1x1xf32> to vector<8x1xf32>
    %45 = arith.addf %42, %44 : vector<8x1xf32>
    %c0_16 = arith.constant 0 : index
    %c0_17 = arith.constant 0 : index
    %46 = vector.load %arg3[%c0_16, %c0_17] : memref<8x1xf32, #tpu.memory_space<vmem>>, vector<8x1xf32>
    tpu.vector_store %arg3[%c0_16, %c0_17], %45 {strides = array<i32>} : memref<8x1xf32, #tpu.memory_space<vmem>>, vector<8x1xf32>,
    return
  }
  func.func @transform_0(%arg0: i32) -> (i32, i32) {
    %c0_i32 = arith.constant 0 : i32
    %c0_i32_0 = arith.constant 0 : i32
    return %arg0, %c0_i32 : i32, i32
  }
  func.func @transform_1(%arg0: i32) -> (i32, i32) {
    %c0_i32 = arith.constant 0 : i32
    %c0_i32_0 = arith.constant 0 : i32
    %c0_i32_1 = arith.constant 0 : i32
    return %c0_i32, %c0_i32_0 : i32, i32
  }
  func.func @transform_2(%arg0: i32) -> (i32, i32) {
    %c0_i32 = arith.constant 0 : i32
    %c0_i32_0 = arith.constant 0 : i32
    return %arg0, %c0_i32 : i32, i32
  }
}

</mosaic_0001>

<llo_original>
// kernel: _lambda_.1
$region0: #{_lambda_.1}
  #allocation0 [shape = 'u32[]', space=smem, size = 0x4, offset = 0x4, fixed_abs, tag = 'smem constant byte address 0x4 - core index']
  #allocation1 [shape = 'u32[144,128]{1,0:T(1,128)}', space=vmem, size = 0x12000, scoped, tag = 'internal scratch']
  %s0 = inlined_call_operand.vmem [shape: f32[32,450], index: 0, kind: input, shape index: {}]
  %s1 = inlined_call_operand.vmem [shape: f32[768,150], index: 1, kind: input, shape index: {}]
  %s2 = inlined_call_operand.vmem [shape: f32[8,1], index: 2, kind: output, shape index: {}]
  %s3 = sld [smem:[#allocation0]]
  $region18: #{_lambda_.1} parent=0
    _
  %s5 = ssub.s32 1, %s3
  %s6 = scalar_select 0, %s5, %s3
  // Predicated region
  $region2: #{_lambda_.1} parent=0 // pred_check
    _
  $region3: #{_lambda_.1} parent=0 // pred_check_branch
    %8 = sbr.rel (0) target = $region5
  $region4: #{_lambda_.1} parent=0 // pred_region
    _
  $region5: #{_lambda_.1} parent=0 // pred_fallthru
    _
  // Predicated region
  $region6: #{_lambda_.1} parent=0 // pred_check
    _
  $region7: #{_lambda_.1} parent=0 // pred_check_branch
    %10 = sbr.rel (0) target = $region9
  $region8: #{_lambda_.1} parent=0 // pred_region
    _
  $region9: #{_lambda_.1} parent=0 // pred_fallthru
    _
  %v11 = vld [vmem:[%s1] sm:$0xff]
  %v12 = vld [vmem:[%s1 + $0x8] sm:$0xff]
  %v13 = vld [vmem:[%s1 + $0x10] sm:$0xff]
  %v14 = vld [vmem:[%s1 + $0x18] sm:$0xff]
  %v15 = vld [vmem:[%s1 + $0x20] sm:$0xff]
  %v16 = vld [vmem:[%s1 + $0x28] sm:$0xff]
  %v17 = vld [vmem:[%s1 + $0x30] sm:$0xff]
  %v18 = vld [vmem:[%s1 + $0x38] sm:$0xff]
  %v19 = vld [vmem:[%s1 + $0x40] sm:$0xff]
  %v20 = vld [vmem:[%s1 + $0x48] sm:$0xff]
  %v21 = vld [vmem:[%s1 + $0x50] sm:$0xff]
  %v22 = vld [vmem:[%s1 + $0x58] sm:$0xff]
  %v23 = vld [vmem:[%s1 + $0x60] sm:$0xff]
  %v24 = vld [vmem:[%s1 + $0x68] sm:$0xff]
  %v25 = vld [vmem:[%s1 + $0x70] sm:$0xff]
  %v26 = vld [vmem:[%s1 + $0x78] sm:$0xff]
  %v27 = vld [vmem:[%s1 + $0x80] sm:$0xff]
  %v28 = vld [vmem:[%s1 + $0x88] sm:$0xff]
  %v29 = vld [vmem:[%s1 + $0x90] sm:$0xff]
  %v30 = vld [vmem:[%s1 + $0x98] sm:$0xff]
  %v31 = vld [vmem:[%s1 + $0xa0] sm:$0xff]
  %v32 = vld [vmem:[%s1 + $0xa8] sm:$0xff]
  %v33 = vld [vmem:[%s1 + $0xb0] sm:$0xff]
  %v34 = vld [vmem:[%s1 + $0xb8] sm:$0xff]
  %v35 = vld [vmem:[%s1 + $0xc0] sm:$0xff]
  %v36 = vld [vmem:[%s1 + $0xc8] sm:$0xff]
  %v37 = vld [vmem:[%s1 + $0xd0] sm:$0xff]
  %v38 = vld [vmem:[%s1 + $0xd8] sm:$0xff]
  %v39 = vld [vmem:[%s1 + $0xe0] sm:$0xff]
  %v40 = vld [vmem:[%s1 + $0xe8] sm:$0xff]
  %v41 = vld [vmem:[%s1 + $0xf0] sm:$0xff]
  %v42 = vld [vmem:[%s1 + $0xf8] sm:$0xff]
  %v43 = vld [vmem:[%s1 + $0x100] sm:$0xff]
  %v44 = vld [vmem:[%s1 + $0x108] sm:$0xff]
  %v45 = vld [vmem:[%s1 + $0x110] sm:$0xff]
  %v46 = vld [vmem:[%s1 + $0x118] sm:$0xff]
  %v47 = vld [vmem:[%s1 + $0x120] sm:$0xff]
  %v48 = vld [vmem:[%s1 + $0x128] sm:$0xff]
  %v49 = vld [vmem:[%s1 + $0x130] sm:$0xff]
  %v50 = vld [vmem:[%s1 + $0x138] sm:$0xff]
  %v51 = vld [vmem:[%s1 + $0x140] sm:$0xff]
  %v52 = vld [vmem:[%s1 + $0x148] sm:$0xff]
  %v53 = vld [vmem:[%s1 + $0x150] sm:$0xff]
  %v54 = vld [vmem:[%s1 + $0x158] sm:$0xff]
  %v55 = vld [vmem:[%s1 + $0x160] sm:$0xff]
  %v56 = vld [vmem:[%s1 + $0x168] sm:$0xff]
  %v57 = vld [vmem:[%s1 + $0x170] sm:$0xff]
  %v58 = vld [vmem:[%s1 + $0x178] sm:$0xff]
  %v59 = vld [vmem:[%s1 + $0x180] sm:$0xff]
  %v60 = vld [vmem:[%s1 + $0x188] sm:$0xff]
  %v61 = vld [vmem:[%s1 + $0x190] sm:$0xff]
  %v62 = vld [vmem:[%s1 + $0x198] sm:$0xff]
  %v63 = vld [vmem:[%s1 + $0x1a0] sm:$0xff]
  %v64 = vld [vmem:[%s1 + $0x1a8] sm:$0xff]
  %v65 = vld [vmem:[%s1 + $0x1b0] sm:$0xff]
  %v66 = vld [vmem:[%s1 + $0x1b8] sm:$0xff]
  %v67 = vld [vmem:[%s1 + $0x1c0] sm:$0xff]
  %v68 = vld [vmem:[%s1 + $0x1c8] sm:$0xff]
  %v69 = vld [vmem:[%s1 + $0x1d0] sm:$0xff]
  %v70 = vld [vmem:[%s1 + $0x1d8] sm:$0xff]
  %v71 = vld [vmem:[%s1 + $0x1e0] sm:$0xff]
  %v72 = vld [vmem:[%s1 + $0x1e8] sm:$0xff]
  %v73 = vld [vmem:[%s1 + $0x1f0] sm:$0xff]
  %v74 = vld [vmem:[%s1 + $0x1f8] sm:$0xff]
  %v75 = vld [vmem:[%s1 + $0x200] sm:$0xff]
  %v76 = vld [vmem:[%s1 + $0x208] sm:$0xff]
  %v77 = vld [vmem:[%s1 + $0x210] sm:$0xff]
  %v78 = vld [vmem:[%s1 + $0x218] sm:$0xff]
  %v79 = vld [vmem:[%s1 + $0x220] sm:$0xff]
  %v80 = vld [vmem:[%s1 + $0x228] sm:$0xff]
  %v81 = vld [vmem:[%s1 + $0x230] sm:$0xff]
  %v82 = vld [vmem:[%s1 + $0x238] sm:$0xff]
  %v83 = vld [vmem:[%s1 + $0x240] sm:$0xff]
  %v84 = vld [vmem:[%s1 + $0x248] sm:$0xff]
  %v85 = vld [vmem:[%s1 + $0x250] sm:$0xff]
  %v86 = vld [vmem:[%s1 + $0x258] sm:$0xff]
  %v87 = vld [vmem:[%s1 + $0x260] sm:$0xff]
  %v88 = vld [vmem:[%s1 + $0x268] sm:$0xff]
  %v89 = vld [vmem:[%s1 + $0x270] sm:$0xff]
  %v90 = vld [vmem:[%s1 + $0x278] sm:$0xff]
  %v91 = vld [vmem:[%s1 + $0x280] sm:$0xff]
  %v92 = vld [vmem:[%s1 + $0x288] sm:$0xff]
  %v93 = vld [vmem:[%s1 + $0x290] sm:$0xff]
  %v94 = vld [vmem:[%s1 + $0x298] sm:$0xff]
  %v95 = vld [vmem:[%s1 + $0x2a0] sm:$0xff]
  %v96 = vld [vmem:[%s1 + $0x2a8] sm:$0xff]
  %v97 = vld [vmem:[%s1 + $0x2b0] sm:$0xff]
  %v98 = vld [vmem:[%s1 + $0x2b8] sm:$0xff]
  %v99 = vld [vmem:[%s1 + $0x2c0] sm:$0xff]
  %v100 = vld [vmem:[%s1 + $0x2c8] sm:$0xff]
  %v101 = vld [vmem:[%s1 + $0x2d0] sm:$0xff]
  %v102 = vld [vmem:[%s1 + $0x2d8] sm:$0xff]
  %v103 = vld [vmem:[%s1 + $0x2e0] sm:$0xff]
  %v104 = vld [vmem:[%s1 + $0x2e8] sm:$0xff]
  %v105 = vld [vmem:[%s1 + $0x2f0] sm:$0xff]
  %v106 = vld [vmem:[%s1 + $0x2f8] sm:$0xff]
  %v107 = vld [vmem:[%s1 + $0x300] sm:$0xff]
  %v108 = vld [vmem:[%s1 + $0x308] sm:$0xff]
  %v109 = vld [vmem:[%s1 + $0x310] sm:$0xff]
  %v110 = vld [vmem:[%s1 + $0x318] sm:$0xff]
  %v111 = vld [vmem:[%s1 + $0x320] sm:$0xff]
  %v112 = vld [vmem:[%s1 + $0x328] sm:$0xff]
  %v113 = vld [vmem:[%s1 + $0x330] sm:$0xff]
  %v114 = vld [vmem:[%s1 + $0x338] sm:$0xff]
  %v115 = vld [vmem:[%s1 + $0x340] sm:$0xff]
  %v116 = vld [vmem:[%s1 + $0x348] sm:$0xff]
  %v117 = vld [vmem:[%s1 + $0x350] sm:$0xff]
  %v118 = vld [vmem:[%s1 + $0x358] sm:$0xff]
  %v119 = vld [vmem:[%s1 + $0x360] sm:$0xff]
  %v120 = vld [vmem:[%s1 + $0x368] sm:$0xff]
  %v121 = vld [vmem:[%s1 + $0x370] sm:$0xff]
  %v122 = vld [vmem:[%s1 + $0x378] sm:$0xff]
  %v123 = vld [vmem:[%s1 + $0x380] sm:$0x3]
  %v124 = vld [vmem:[%s1 + $0x388] sm:$0x3]
  %v125 = vld [vmem:[%s0] sm:$0xff]
  %v126 = vld [vmem:[%s0 + $0x8] sm:$0xff]
  %v127 = vld [vmem:[%s0 + $0x10] sm:$0xff]
  %v128 = vld [vmem:[%s0 + $0x18] sm:$0xff]
  %v129 = vld [vmem:[%s0 + $0x20] sm:$0xff]
  %v130 = vld [vmem:[%s0 + $0x28] sm:$0xff]
  %v131 = vld [vmem:[%s0 + $0x30] sm:$0xff]
  %v132 = vld [vmem:[%s0 + $0x38] sm:$0xff]
  %v133 = vld [vmem:[%s0 + $0x40] sm:$0xff]
  %v134 = vld [vmem:[%s0 + $0x48] sm:$0xff]
  %v135 = vld [vmem:[%s0 + $0x50] sm:$0xff]
  %v136 = vld [vmem:[%s0 + $0x58] sm:$0xff]
  %v137 = vld [vmem:[%s0 + $0x60] sm:$0xff]
  %v138 = vld [vmem:[%s0 + $0x68] sm:$0xff]
  %v139 = vld [vmem:[%s0 + $0x70] sm:$0xff]
  %v140 = vld [vmem:[%s0 + $0x78] sm:$0xff]
  %vm141 = vcmask 539648
  %v143 = vsel %vm141, %v128, 0
  %v146 = vsel %vm141, %v132, 0
  %v149 = vsel %vm141, %v136, 0
  %v152 = vsel %vm141, %v140, 0
  %vm154 = vcmask 1041408
  %v156 = vsel %vm154, %v123, 0
  %v159 = vsel %vm154, %v124, 0
  %161 = vmatprep.subr.mxu0 %v12
  %162 = vmatpush1.msra.mxu0 %v11
  %163 = vmatprep.subr.mxu0 %v14
  %164 = vmatpush1.msra.mxu0 %v13
  %165 = vmatprep.subr.mxu0 %v16
  %166 = vmatpush1.msra.mxu0 %v15
  %167 = vmatprep.subr.mxu0 %v18
  %168 = vmatpush1.msra.mxu0 %v17
  %169 = vmatprep.subr.mxu0 %v20
  %170 = vmatpush1.msra.mxu0 %v19
  %171 = vmatprep.subr.mxu0 %v22
  %172 = vmatpush1.msra.mxu0 %v21
  %173 = vmatprep.subr.mxu0 %v24
  %174 = vmatpush1.msra.mxu0 %v23
  %175 = vmatprep.subr.mxu0 %v26
  %176 = vmatpush1.msra.mxu0 %v25
  %177 = vmatprep.subr.mxu0 %v28
  %178 = vmatpush1.msra.mxu0 %v27
  %179 = vmatprep.subr.mxu0 %v30
  %180 = vmatpush1.msra.mxu0 %v29
  %181 = vmatprep.subr.mxu0 %v32
  %182 = vmatpush1.msra.mxu0 %v31
  %183 = vmatprep.subr.mxu0 %v34
  %184 = vmatpush1.msra.mxu0 %v33
  %185 = vmatprep.subr.mxu0 %v36
  %186 = vmatpush1.msra.mxu0 %v35
  %187 = vmatprep.subr.mxu0 %v38
  %188 = vmatpush1.msra.mxu0 %v37
  %189 = vmatprep.subr.mxu0 %v40
  %190 = vmatpush1.msra.mxu0 %v39
  %191 = vmatprep.subr.mxu0 %v42
  %192 = vmatpush1.msra.mxu0 %v41
  %193 = vmatprep.subr.mxu0 %v44
  %194 = vmatpush1.msra.mxu0 %v43
  %195 = vmatprep.subr.mxu0 %v46
  %196 = vmatpush1.msra.mxu0 %v45
  %197 = vmatprep.subr.mxu0 %v48
  %198 = vmatpush1.msra.mxu0 %v47
  %199 = vmatprep.subr.mxu0 %v50
  %200 = vmatpush1.msra.mxu0 %v49
  %201 = vmatprep.subr.mxu0 %v52
  %202 = vmatpush1.msra.mxu0 %v51
  %203 = vmatprep.subr.mxu0 %v54
  %204 = vmatpush1.msra.mxu0 %v53
  %205 = vmatprep.subr.mxu0 %v56
  %206 = vmatpush1.msra.mxu0 %v55
  %207 = vmatprep.subr.mxu0 %v58
  %208 = vmatpush1.msra.mxu0 %v57
  %209 = vmatprep.subr.mxu0 %v60
  %210 = vmatpush1.msra.mxu0 %v59
  %211 = vmatprep.subr.mxu0 %v62
  %212 = vmatpush1.msra.mxu0 %v61
  %213 = vmatprep.subr.mxu0 %v64
  %214 = vmatpush1.msra.mxu0 %v63
  %215 = vmatprep.subr.mxu0 %v66
  %216 = vmatpush1.msra.mxu0 %v65
  %217 = vmatprep.subr.mxu0 %v68
  %218 = vmatpush1.msra.mxu0 %v67
  %219 = vmatprep.subr.mxu0 %v70
  %220 = vmatpush1.msra.mxu0 %v69
  %221 = vmatprep.subr.mxu0 %v72
  %222 = vmatpush1.msra.mxu0 %v71
  %223 = vmatprep.subr.mxu0 %v74
  %224 = vmatpush1.msra.mxu0 %v73
  %225 = vmatprep.mubr.f32.mxu0 %v126
  %226 = vmatmul.mubr.f32.gmra.mrb[0].mxu0 %v125
  %v227 = vpop.f32.mrb[0].mxu0
  %v228 = vadd.f32 0.0, %v227
  %v229 = vpop.f32.mrb[0].mxu0
  %v230 = vadd.f32 0.0, %v229
  %231 = vmatprep.mubr.f32.mxu0 %v130
  %232 = vmatmul.mubr.f32.gmra.mrb[0].mxu0 %v129
  %v233 = vpop.f32.mrb[0].mxu0
  %v234 = vadd.f32 0.0, %v233
  %v235 = vpop.f32.mrb[0].mxu0
  %v236 = vadd.f32 0.0, %v235
  %237 = vmatprep.mubr.f32.mxu0 %v134
  %238 = vmatmul.mubr.f32.gmra.mrb[0].mxu0 %v133
  %v239 = vpop.f32.mrb[0].mxu0
  %v240 = vadd.f32 0.0, %v239
  %v241 = vpop.f32.mrb[0].mxu0
  %v242 = vadd.f32 0.0, %v241
  %243 = vmatprep.mubr.f32.mxu0 %v138
  %244 = vmatmul.mubr.f32.gmra.mrb[0].mxu0 %v137
  %v245 = vpop.f32.mrb[0].mxu0
  %v246 = vadd.f32 0.0, %v245
  %v247 = vpop.f32.mrb[0].mxu0
  %v248 = vadd.f32 0.0, %v247
  %249 = vdwg.mxu0
  %250 = vmatprep.subr.mxu0 %v76
  %251 = vmatpush1.msra.mxu0 %v75
  %252 = vmatprep.subr.mxu0 %v78
  %253 = vmatpush1.msra.mxu0 %v77
  %254 = vmatprep.subr.mxu0 %v80
  %255 = vmatpush1.msra.mxu0 %v79
  %256 = vmatprep.subr.mxu0 %v82
  %257 = vmatpush1.msra.mxu0 %v81
  %258 = vmatprep.subr.mxu0 %v84
  %259 = vmatpush1.msra.mxu0 %v83
  %260 = vmatprep.subr.mxu0 %v86
  %261 = vmatpush1.msra.mxu0 %v85
  %262 = vmatprep.subr.mxu0 %v88
  %263 = vmatpush1.msra.mxu0 %v87
  %264 = vmatprep.subr.mxu0 %v90
  %265 = vmatpush1.msra.mxu0 %v89
  %266 = vmatprep.subr.mxu0 %v92
  %267 = vmatpush1.msra.mxu0 %v91
  %268 = vmatprep.subr.mxu0 %v94
  %269 = vmatpush1.msra.mxu0 %v93
  %270 = vmatprep.subr.mxu0 %v96
  %271 = vmatpush1.msra.mxu0 %v95
  %272 = vmatprep.subr.mxu0 %v98
  %273 = vmatpush1.msra.mxu0 %v97
  %274 = vmatprep.subr.mxu0 %v100
  %275 = vmatpush1.msra.mxu0 %v99
  %276 = vmatprep.subr.mxu0 %v102
  %277 = vmatpush1.msra.mxu0 %v101
  %278 = vmatprep.subr.mxu0 %v104
  %279 = vmatpush1.msra.mxu0 %v103
  %280 = vmatprep.subr.mxu0 %v106
  %281 = vmatpush1.msra.mxu0 %v105
  %282 = vmatprep.subr.mxu0 %v108
  %283 = vmatpush1.msra.mxu0 %v107
  %284 = vmatprep.subr.mxu0 %v110
  %285 = vmatpush1.msra.mxu0 %v109
  %286 = vmatprep.subr.mxu0 %v112
  %287 = vmatpush1.msra.mxu0 %v111
  %288 = vmatprep.subr.mxu0 %v114
  %289 = vmatpush1.msra.mxu0 %v113
  %290 = vmatprep.subr.mxu0 %v116
  %291 = vmatpush1.msra.mxu0 %v115
  %292 = vmatprep.subr.mxu0 %v118
  %293 = vmatpush1.msra.mxu0 %v117
  %294 = vmatprep.subr.mxu0 %v120
  %295 = vmatpush1.msra.mxu0 %v119
  %296 = vmatprep.subr.mxu0 %v122
  %297 = vmatpush1.msra.mxu0 %v121
  %298 = vmatprep.subr.mxu0 %v159
  %299 = vmatpush1.msra.mxu0 %v156
  %300 = vmatprep.subr.mxu0 0.0
  %301 = vmatpush1.msra.mxu0 0.0
  %302 = vmatprep.subr.mxu0 0.0
  %303 = vmatpush1.msra.mxu0 0.0
  %304 = vmatprep.subr.mxu0 0.0
  %305 = vmatpush1.msra.mxu0 0.0
  %306 = vmatprep.subr.mxu0 0.0
  %307 = vmatpush1.msra.mxu0 0.0
  %308 = vmatprep.subr.mxu0 0.0
  %309 = vmatpush1.msra.mxu0 0.0
  %310 = vmatprep.subr.mxu0 0.0
  %311 = vmatpush1.msra.mxu0 0.0
  %312 = vmatprep.subr.mxu0 0.0
  %313 = vmatpush1.msra.mxu0 0.0
  %314 = vmatprep.mubr.f32.mxu0 %v143
  %315 = vmatmul.mubr.f32.gmra.mrb[0].mxu0 %v127
  %v316 = vpop.f32.mrb[0].mxu0
  %v317 = vadd.f32 %v228, %v316
  %v318 = vpop.f32.mrb[0].mxu0
  %v319 = vadd.f32 %v230, %v318
  %320 = vmatprep.mubr.f32.mxu0 %v146
  %321 = vmatmul.mubr.f32.gmra.mrb[0].mxu0 %v131
  %v322 = vpop.f32.mrb[0].mxu0
  %v323 = vadd.f32 %v234, %v322
  %v324 = vpop.f32.mrb[0].mxu0
  %v325 = vadd.f32 %v236, %v324
  %326 = vmatprep.mubr.f32.mxu0 %v149
  %327 = vmatmul.mubr.f32.gmra.mrb[0].mxu0 %v135
  %v328 = vpop.f32.mrb[0].mxu0
  %v329 = vadd.f32 %v240, %v328
  %v330 = vpop.f32.mrb[0].mxu0
  %v331 = vadd.f32 %v242, %v330
  %332 = vmatprep.mubr.f32.mxu0 %v152
  %333 = vmatmul.mubr.f32.gmra.mrb[0].mxu0 %v139
  %v334 = vpop.f32.mrb[0].mxu0
  %v335 = vadd.f32 %v246, %v334
  %v336 = vpop.f32.mrb[0].mxu0
  %v337 = vadd.f32 %v248, %v336
  %338 = vdwg.mxu0
  %v339 = vmax.f32 %v317, %v323
  %v340 = vmax.f32 %v319, %v325
  %v341 = vmax.f32 %v329, %v335
  %v342 = vmax.f32 %v331, %v337
  %v343 = vmax.f32 %v339, %v341
  %v344 = vmax.f32 %v340, %v342
  %s345 = scalar_lea.vmem %s1, 912
  %v346 = vld [vmem:[%s345] ss:$8 sm:$0x3]
  %v348 = vlaneseq
  %v349 = vshrl.u32 %v348, 7
  %v350 = vsub.s32 0, %v349
  %v351 = vrot.slane %v346, %v350
  %v352 = vlaneseq
  %v353 = vshrl.u32 %v352, 7
  %v354 = vsub.s32 1, %v353
  %v355 = vrot.slane %v346, %v354
  %v358 = vadd.f32 %v343, %v351
  %v359 = vadd.f32 %v344, %v355
  %v360 = vxor.u32 %v358, 2147483648
  %v361 = vxor.u32 %v359, 2147483648
  %v362 = vmul.f32 %v360, 1.442695
  %v363 = vpow.pop %v362
  %v364 = vmul.f32 %v361, 1.442695
  %v365 = vpow.pop %v364
  %v366 = vadd.f32 %v363, 1.0
  %v367 = vadd.f32 %v365, 1.0
  %v368 = vrcp.pop %v366
  %v369 = vmul.f32 1.0, %v368
  %v370 = vrcp.pop %v367
  %v371 = vmul.f32 1.0, %v370
  %v372 = vld [vmem:[%s1 + $0x3a0] sm:$0xff]
  %v373 = vld [vmem:[%s1 + $0x3b0] sm:$0xff]
  %v374 = vld [vmem:[%s1 + $0x3c0] sm:$0xff]
  %v375 = vld [vmem:[%s1 + $0x3d0] sm:$0xff]
  %v376 = vld [vmem:[%s1 + $0x3e0] sm:$0xff]
  %v377 = vld [vmem:[%s1 + $0x3f0] sm:$0xff]
  %v378 = vld [vmem:[%s1 + $0x400] sm:$0xff]
  %v379 = vld [vmem:[%s1 + $0x410] sm:$0xff]
  %v380 = vld [vmem:[%s1 + $0x420] sm:$0xff]
  %v381 = vld [vmem:[%s1 + $0x430] sm:$0xff]
  %v382 = vld [vmem:[%s1 + $0x440] sm:$0xff]
  %v383 = vld [vmem:[%s1 + $0x450] sm:$0xff]
  %v384 = vld [vmem:[%s1 + $0x460] sm:$0xff]
  %v385 = vld [vmem:[%s1 + $0x470] sm:$0xff]
  %v386 = vld [vmem:[%s1 + $0x480] sm:$0xff]
  %v387 = vld [vmem:[%s1 + $0x490] sm:$0xff]
  %v388 = vld [vmem:[%s1 + $0x4a0] sm:$0xff]
  %v389 = vld [vmem:[%s1 + $0x4b0] sm:$0xff]
  %v390 = vld [vmem:[%s1 + $0x4c0] sm:$0x3f]
  %v391 = vld [vmem:[%s1 + $0x4d0] ss:$0 sm:$0xff]
  %vm392 = vcmask 179200
  %v394 = vsel %vm392, %v371, 0
  %vm396 = vcmask 1045504
  %v398 = vsel %vm396, %v390, 0
  %400 = vmatprep.subr.mxu0 0.0
  %401 = vmatpush1.msra.mxu0 %v372
  %402 = vmatprep.subr.mxu0 0.0
  %403 = vmatpush1.msra.mxu0 %v373
  %404 = vmatprep.subr.mxu0 0.0
  %405 = vmatpush1.msra.mxu0 %v374
  %406 = vmatprep.subr.mxu0 0.0
  %407 = vmatpush1.msra.mxu0 %v375
  %408 = vmatprep.subr.mxu0 0.0
  %409 = vmatpush1.msra.mxu0 %v376
  %410 = vmatprep.subr.mxu0 0.0
  %411 = vmatpush1.msra.mxu0 %v377
  %412 = vmatprep.subr.mxu0 0.0
  %413 = vmatpush1.msra.mxu0 %v378
  %414 = vmatprep.subr.mxu0 0.0
  %415 = vmatpush1.msra.mxu0 %v379
  %416 = vmatprep.subr.mxu0 0.0
  %417 = vmatpush1.msra.mxu0 %v380
  %418 = vmatprep.subr.mxu0 0.0
  %419 = vmatpush1.msra.mxu0 %v381
  %420 = vmatprep.subr.mxu0 0.0
  %421 = vmatpush1.msra.mxu0 %v382
  %422 = vmatprep.subr.mxu0 0.0
  %423 = vmatpush1.msra.mxu0 %v383
  %424 = vmatprep.subr.mxu0 0.0
  %425 = vmatpush1.msra.mxu0 %v384
  %426 = vmatprep.subr.mxu0 0.0
  %427 = vmatpush1.msra.mxu0 %v385
  %428 = vmatprep.subr.mxu0 0.0
  %429 = vmatpush1.msra.mxu0 %v386
  %430 = vmatprep.subr.mxu0 0.0
  %431 = vmatpush1.msra.mxu0 %v387
  %432 = vmatprep.subr.mxu0 0.0
  %433 = vmatpush1.msra.mxu0 %v388
  %434 = vmatprep.subr.mxu0 0.0
  %435 = vmatpush1.msra.mxu0 %v389
  %436 = vmatprep.subr.mxu0 0.0
  %437 = vmatpush1.msra.mxu0 %v398
  %438 = vmatprep.subr.mxu0 0.0
  %439 = vmatpush1.msra.mxu0 0.0
  %440 = vmatprep.subr.mxu0 0.0
  %441 = vmatpush1.msra.mxu0 0.0
  %442 = vmatprep.subr.mxu0 0.0
  %443 = vmatpush1.msra.mxu0 0.0
  %444 = vmatprep.subr.mxu0 0.0
  %445 = vmatpush1.msra.mxu0 0.0
  %446 = vmatprep.subr.mxu0 0.0
  %447 = vmatpush1.msra.mxu0 0.0
  %448 = vmatprep.subr.mxu0 0.0
  %449 = vmatpush1.msra.mxu0 0.0
  %450 = vmatprep.subr.mxu0 0.0
  %451 = vmatpush1.msra.mxu0 0.0
  %452 = vmatprep.subr.mxu0 0.0
  %453 = vmatpush1.msra.mxu0 0.0
  %454 = vmatprep.subr.mxu0 0.0
  %455 = vmatpush1.msra.mxu0 0.0
  %456 = vmatprep.subr.mxu0 0.0
  %457 = vmatpush1.msra.mxu0 0.0
  %458 = vmatprep.subr.mxu0 0.0
  %459 = vmatpush1.msra.mxu0 0.0
  %460 = vmatprep.subr.mxu0 0.0
  %461 = vmatpush1.msra.mxu0 0.0
  %462 = vmatprep.subr.mxu0 0.0
  %463 = vmatpush1.msra.mxu0 0.0
  %464 = vmatprep.mubr.f32.mxu0 %v394
  %465 = vmatmul.mubr.f32.gmra.mrb[0].mxu0 %v369
  %v466 = vpop.f32.mrb[0].mxu0
  %v467 = vadd.f32 %v391, %v466
  %v468 = vpop.f32.mrb[0].mxu0
  %469 = vdwg.mxu0
  %v470 = vxor.u32 %v467, 2147483648
  %v471 = vmul.f32 %v470, 1.442695
  %v472 = vpow.pop %v471
  %v473 = vadd.f32 %v472, 1.0
  %v474 = vrcp.pop %v473
  %v475 = vmul.f32 1.0, %v474
  %v476 = vld [vmem:[%s1 + $0x4e0] sm:$0xff]
  %v477 = vld [vmem:[%s1 + $0x4f0] sm:$0xff]
  %v478 = vld [vmem:[%s1 + $0x500] sm:$0xff]
  %v479 = vld [vmem:[%s1 + $0x510] sm:$0xff]
  %v480 = vld [vmem:[%s1 + $0x520] sm:$0xff]
  %v481 = vld [vmem:[%s1 + $0x530] sm:$0xff]
  %v482 = vld [vmem:[%s1 + $0x540] sm:$0xff]
  %v483 = vld [vmem:[%s1 + $0x550] sm:$0xff]
  %v484 = vld [vmem:[%s1 + $0x560] sm:$0xff]
  %v485 = vld [vmem:[%s1 + $0x570] sm:$0xff]
  %v486 = vld [vmem:[%s1 + $0x580] sm:$0xff]
  %v487 = vld [vmem:[%s1 + $0x590] sm:$0xff]
  %v488 = vld [vmem:[%s1 + $0x5a0] sm:$0xff]
  %v489 = vld [vmem:[%s1 + $0x5b0] sm:$0xff]
  %v490 = vld [vmem:[%s1 + $0x5c0] sm:$0xff]
  %v491 = vld [vmem:[%s1 + $0x5d0] ss:$0 sm:$0xff]
  %vm492 = vcmask 982016
  %v494 = vsel %vm492, %v475, 0
  %496 = vmatprep.subr.mxu0 0.0
  %497 = vmatpush1.msra.mxu0 %v476
  %498 = vmatprep.subr.mxu0 0.0
  %499 = vmatpush1.msra.mxu0 %v477
  %500 = vmatprep.subr.mxu0 0.0
  %501 = vmatpush1.msra.mxu0 %v478
  %502 = vmatprep.subr.mxu0 0.0
  %503 = vmatpush1.msra.mxu0 %v479
  %504 = vmatprep.subr.mxu0 0.0
  %505 = vmatpush1.msra.mxu0 %v480
  %506 = vmatprep.subr.mxu0 0.0
  %507 = vmatpush1.msra.mxu0 %v481
  %508 = vmatprep.subr.mxu0 0.0
  %509 = vmatpush1.msra.mxu0 %v482
  %510 = vmatprep.subr.mxu0 0.0
  %511 = vmatpush1.msra.mxu0 %v483
  %512 = vmatprep.subr.mxu0 0.0
  %513 = vmatpush1.msra.mxu0 %v484
  %514 = vmatprep.subr.mxu0 0.0
  %515 = vmatpush1.msra.mxu0 %v485
  %516 = vmatprep.subr.mxu0 0.0
  %517 = vmatpush1.msra.mxu0 %v486
  %518 = vmatprep.subr.mxu0 0.0
  %519 = vmatpush1.msra.mxu0 %v487
  %520 = vmatprep.subr.mxu0 0.0
  %521 = vmatpush1.msra.mxu0 %v488
  %522 = vmatprep.subr.mxu0 0.0
  %523 = vmatpush1.msra.mxu0 %v489
  %524 = vmatprep.subr.mxu0 0.0
  %525 = vmatpush1.msra.mxu0 %v490
  %526 = vmatprep.subr.mxu0 0.0
  %527 = vmatpush1.msra.mxu0 0.0
  %528 = vmatprep.subr.mxu0 0.0
  %529 = vmatpush1.msra.mxu0 0.0
  %530 = vmatprep.subr.mxu0 0.0
  %531 = vmatpush1.msra.mxu0 0.0
  %532 = vmatprep.subr.mxu0 0.0
  %533 = vmatpush1.msra.mxu0 0.0
  %534 = vmatprep.subr.mxu0 0.0
  %535 = vmatpush1.msra.mxu0 0.0
  %536 = vmatprep.subr.mxu0 0.0
  %537 = vmatpush1.msra.mxu0 0.0
  %538 = vmatprep.subr.mxu0 0.0
  %539 = vmatpush1.msra.mxu0 0.0
  %540 = vmatprep.subr.mxu0 0.0
  %541 = vmatpush1.msra.mxu0 0.0
  %542 = vmatprep.subr.mxu0 0.0
  %543 = vmatpush1.msra.mxu0 0.0
  %544 = vmatprep.subr.mxu0 0.0
  %545 = vmatpush1.msra.mxu0 0.0
  %546 = vmatprep.subr.mxu0 0.0
  %547 = vmatpush1.msra.mxu0 0.0
  %548 = vmatprep.subr.mxu0 0.0
  %549 = vmatpush1.msra.mxu0 0.0
  %550 = vmatprep.subr.mxu0 0.0
  %551 = vmatpush1.msra.mxu0 0.0
  %552 = vmatprep.subr.mxu0 0.0
  %553 = vmatpush1.msra.mxu0 0.0
  %554 = vmatprep.subr.mxu0 0.0
  %555 = vmatpush1.msra.mxu0 0.0
  %556 = vmatprep.subr.mxu0 0.0
  %557 = vmatpush1.msra.mxu0 0.0
  %558 = vmatprep.subr.mxu0 0.0
  %559 = vmatpush1.msra.mxu0 0.0
  %560 = vmatprep.mubr.f32.mxu0 0.0
  %561 = vmatmul.mubr.f32.gmra.mrb[0].mxu0 %v494
  %v562 = vpop.f32.mrb[0].mxu0
  %v563 = vadd.f32 %v491, %v562
  %v564 = vpop.f32.mrb[0].mxu0
  %565 = vdwg.mxu0
  %v566 = vxor.u32 %v563, 2147483648
  %v567 = vmul.f32 %v566, 1.442695
  %v568 = vpow.pop %v567
  %v569 = vadd.f32 %v568, 1.0
  %v570 = vrcp.pop %v569
  %v571 = vmul.f32 1.0, %v570
  %v572 = vld [vmem:[%s1 + $0x5e0] ss:$0 sm:$0xff]
  %v573 = vmul.f32 %v571, %v572
  %vm574 = vcmask 687104
  %v575 = vsel %vm574, %v573, 0.0
  %576 = vadd.xlane.f32.xlu0 %v575
  %v577 = vpop.xlane.xlu0 %576
  %v578 = vld [vmem:[%s1 + $0x5f0] ss:$0 sm:$0xff]
  %v579 = vadd.f32 %v577, %v578
  %vm580 = vcmask 7168
  %581 = vst.msk [vmem:[%s2] sm:$0xff] %vm580, %v579
  // Predicated region
  $region10: #{_lambda_.1} parent=0 // pred_check
    _
  $region11: #{_lambda_.1} parent=0 // pred_check_branch
    %583 = sbr.rel (0) target = $region13
  $region12: #{_lambda_.1} parent=0 // pred_region
    _
  $region13: #{_lambda_.1} parent=0 // pred_fallthru
    _
  // Predicated region
  $region14: #{_lambda_.1} parent=0 // pred_check
    _
  $region15: #{_lambda_.1} parent=0 // pred_check_branch
    %585 = sbr.rel (0) target = $region17
  $region16: #{_lambda_.1} parent=0 // pred_region
    _
  $region17: #{_lambda_.1} parent=0 // pred_fallthru
    _

</llo_original>
